<compile_context>
chip_gen: v5e
topology: v5e:2x2
jax: 0.10.0
libtpu: 0.0.40
codegen_flags: <defaults>
</compile_context>

<pallas_src>
import math
import jax
import jax.numpy as jnp
from jax.experimental import pallas as pl
from jax.experimental.pallas import tpu as pltpu


def _cdiv(a, b):
    return (a + b - 1) // b


def _round_up(a, b):
    return _cdiv(a, b) * b


# ---------------------------------------------------------------------------
# Kernels
# ---------------------------------------------------------------------------

def _conv1x1_kernel_fused(x_ref, w_ref, b_ref, o_ref):
    # Single-K-block fast path: no accumulator scratch, no init/finalize.
    # x_ref: (tile_k, tile_hw), w_ref: (tile_m, tile_k), b_ref: (tile_m, 1) f32
    acc = jnp.dot(w_ref[...], x_ref[...], preferred_element_type=jnp.float32)
    o_ref[...] = (acc + b_ref[...]).astype(o_ref.dtype)


def _conv1x1_kernel_acc(x_ref, w_ref, b_ref, o_ref, acc_ref):
    # General path: f32 accumulator resident across the K (C_in) grid axis.
    k = pl.program_id(3)

    @pl.when(k == 0)
    def _():
        acc_ref[...] = jnp.zeros_like(acc_ref)

    acc_ref[...] += jnp.dot(
        w_ref[...], x_ref[...], preferred_element_type=jnp.float32
    )

    @pl.when(k == pl.num_programs(3) - 1)
    def _():
        o_ref[...] = (acc_ref[...] + b_ref[...]).astype(o_ref.dtype)


# ---------------------------------------------------------------------------
# Tiling heuristics
# ---------------------------------------------------------------------------

def _vmem_capacity_bytes():
    """Per-core VMEM capacity; conservative (v7x-sized) fallback if unqueryable."""
    try:
        info = pltpu.get_tpu_info()
        cap = int(getattr(info, "vmem_capacity_bytes", 0) or 0)
        if cap > 0:
            return cap
    except Exception:
        pass
    return 64 * 1024 * 1024


def _pick_tile_m(c_out):
    """Tile C_out only when it is very wide, so acc/weight blocks stay bounded."""
    if c_out <= 512:
        return c_out
    if c_out % 256 == 0:
        return 256
    if c_out % 128 == 0:
        return 128
    return 256   # ragged last M block: OOB output rows are masked on the write


def _pick_tile_k(c_in, tile_m, itemsize, capacity):
    """C_in (reduction) tile.  Keep the weight block resident unless it is huge."""
    resident_thresh = max(8 << 20, capacity // 5)   # ~12.8 MiB (64 MiB VMEM) / ~25.6 MiB (128 MiB)
    if tile_m * c_in * itemsize <= resident_thresh:
        return c_in, 0
    if c_in % 256 == 0:
        return 256, 0
    if c_in % 128 == 0:
        return 128, 0
    # Huge weight with awkward C_in: zero-pad the reduction axis to a 128 multiple
    # so K tiling is exact (never reduce over garbage lanes).
    c_in_p = _round_up(c_in, 128)
    tile_k = 256 if c_in_p % 256 == 0 else 128
    return tile_k, c_in_p - c_in


def _pick_tile_hw(hw, n, tile_k, tile_m, multi_k, single_buffer_w, itemsize, budget):
    """Largest lane-dense spatial tile fitting the VMEM budget (sublane-padded)."""
    sub = max(8, 32 // itemsize)                 # sublane multiple for this dtype
    tk_p = _round_up(tile_k, sub)
    tm_p = _round_up(tile_m, sub)
    tm_f32 = _round_up(tile_m, 8)
    n_wbuf = 1 if single_buffer_w else 2
    fixed = n_wbuf * tm_p * _round_up(tile_k, 128) * itemsize      # weight buffer(s)
    fixed += n_wbuf * tm_f32 * 128 * 4                             # f32 bias (lane-padded)
    per_lane = 2 * (tk_p + tm_p) * itemsize                        # dbl-buffered x + out
    if multi_k:
        per_lane += tm_f32 * 4                                     # f32 accumulator
    avail = max(budget - fixed, per_lane * 128)
    tile_hw = (avail // per_lane) // 128 * 128
    tile_hw = int(max(128, min(tile_hw, 32768)))
    if hw <= tile_hw:
        tile_hw = hw                      # single full-extent tile: no pad, no mask
    # Megacore occupancy (v7x): make sure there are >= 2 (batch, spatial) work items.
    if n == 1 and tile_hw >= hw and hw >= 256:
        tile_hw = max(128, _round_up(_cdiv(hw, 2), 128))
    return tile_hw


# ---------------------------------------------------------------------------
# Wrapper
# ---------------------------------------------------------------------------

def conv1x1(x_nchw, weight, bias=None):
    """1x1 conv.  x_nchw: (N, C_in, H, W); weight: (C_out, C_in, 1, 1); bias: (C_out,)."""
    n, c_in, h, w = x_nchw.shape
    c_out = weight.shape[0]
    hw = h * w
    dtype = x_nchw.dtype
    itemsize = jnp.dtype(dtype).itemsize

    capacity = _vmem_capacity_bytes()
    tile_budget = capacity // 2                  # ~32 MiB on v7x, ~64 MiB on v5e/v6e
    vmem_limit = capacity * 3 // 4               # ~48 MiB on v7x, ~96 MiB on v5e/v6e

    # Pure reshapes: channels stay on sublanes, spatial is the lane axis. No transposes.
    x_rows = x_nchw.reshape(n, c_in, hw)                    # (N, C_in, HW)
    w_mat = weight.reshape(c_out, c_in).astype(dtype)       # (C_out, C_in)
    if bias is None:
        bias = jnp.zeros((c_out,), jnp.float32)
    b_col = bias.astype(jnp.float32).reshape(c_out, 1)      # f32 bias, added pre-downcast

    tile_m = _pick_tile_m(c_out)
    tile_k, pad_k = _pick_tile_k(c_in, tile_m, itemsize, capacity)
    if pad_k:
        # Rare path: only when the weight is too big to keep resident AND C_in is
        # not a 128 multiple.  Zero rows in W / zero channels in X keep the math exact.
        x_rows = jnp.pad(x_rows, ((0, 0), (0, pad_k), (0, 0)))
        w_mat = jnp.pad(w_mat, ((0, 0), (0, pad_k)))
    c_in_p = c_in + pad_k

    num_k = _cdiv(c_in_p, tile_k)       # exact: padded or tile_k == c_in_p
    num_m = _cdiv(c_out, tile_m)
    multi_k = num_k > 1
    single_resident = (num_k == 1 and num_m == 1)   # weight/bias block index constant

    tile_hw = _pick_tile_hw(hw, n, tile_k, tile_m, multi_k, single_resident,
                            itemsize, tile_budget)
    num_j = _cdiv(hw, tile_hw)          # ragged last tile handled by masked writes
    grid = (n, num_j, num_m, num_k)

    kernel = _conv1x1_kernel_acc if multi_k else _conv1x1_kernel_fused
    scratch = [pltpu.VMEM((tile_m, tile_hw), jnp.float32)] if multi_k else []

    w_stream_bytes = c_out * c_in_p * itemsize * (1 if single_resident else n * num_j)
    cost = pl.CostEstimate(
        flops=2 * n * hw * c_in * c_out,
        transcendentals=0,
        bytes_accessed=n * hw * (c_in + c_out) * itemsize + w_stream_bytes + c_out * 4,
    )

    def _run(single_buffer_w):
        wb_kwargs = {"pipeline_mode": pl.Buffered(1)} if single_buffer_w else {}
        in_specs = [
            # x: batch squeezed; channels on sublanes, spatial tile on lanes
            pl.BlockSpec((None, tile_k, tile_hw), lambda b, j, m, k: (b, k, j)),
            # weight: (C_out tile, C_in tile); resident & single-buffered when constant
            pl.BlockSpec((tile_m, tile_k), lambda b, j, m, k: (m, k), **wb_kwargs),
            # bias: f32 column
            pl.BlockSpec((tile_m, 1), lambda b, j, m, k: (m, 0), **wb_kwargs),
        ]
        out_spec = pl.BlockSpec((None, tile_m, tile_hw), lambda b, j, m, k: (b, m, j))
        return pl.pallas_call(
            kernel,
            out_shape=jax.ShapeDtypeStruct((n, c_out, hw), dtype),
            grid_spec=pltpu.PrefetchScalarGridSpec(
                num_scalar_prefetch=0,
                grid=grid,
                in_specs=in_specs,
                out_specs=out_spec,
                scratch_shapes=scratch,
            ),
            compiler_params=pltpu.CompilerParams(
                # batch / spatial / C_out tiles parallel (megacore), K reduction last.
                dimension_semantics=("parallel", "parallel", "parallel", "arbitrary"),
                vmem_limit_bytes=int(vmem_limit),
            ),
            cost_estimate=cost,
        )(x_rows, w_mat, b_col)

    if single_resident:
        try:
            out_rows = _run(True)      # single-buffer the resident weight/bias
        except Exception:
            out_rows = _run(False)     # fallback if Buffered(1) is unsupported
    else:
        out_rows = _run(False)

    # (N, C_out, HW) -> (N, C_out, H, W): free reshape, no transpose.
    return out_rows.reshape(n, c_out, h, w)


# ---------------------------------------------------------------------------
# Parameter init mimicking nn.Conv2d defaults (kaiming-uniform, a=sqrt(5))
# ---------------------------------------------------------------------------

def init_params(key, dim1, dim2, bias=True):
    kw, kb = jax.random.split(key)
    fan_in = dim1 * 1 * 1
    bound_w = math.sqrt(1.0 / fan_in) * math.sqrt(3.0)
    weight = jax.random.uniform(kw, (dim2, dim1, 1, 1), jnp.float32,
                                minval=-bound_w, maxval=bound_w)
    if bias:
        bound_b = 1.0 / math.sqrt(fan_in)
        b = jax.random.uniform(kb, (dim2,), jnp.float32,
                               minval=-bound_b, maxval=bound_b)
    else:
        b = jnp.zeros((dim2,), jnp.float32)
    return weight, b


if __name__ == "__main__":
    key = jax.random.PRNGKey(0)
    k_x, k_p = jax.random.split(key)

    N, C_IN, C_OUT, H, W = 2, 4, 8, 16, 16
    x = jax.random.normal(k_x, (N, C_IN, H, W), jnp.float32)
    weight, bias = init_params(k_p, C_IN, C_OUT, bias=True)

    out = conv1x1(x, weight, bias)
    out = jax.block_until_ready(out)

    # pure-JAX reference (1x1 conv == channel matmul)
    ref = jnp.einsum("nchw,oc->nohw", x, weight.reshape(C_OUT, C_IN)) \
        + bias.reshape(1, C_OUT, 1, 1)
    assert out.shape == (N, C_OUT, H, W)
    assert jnp.allclose(out, ref, atol=1e-5, rtol=1e-5)

    print("KERNEL_OK")
</pallas_src>

<mosaic_0001>
module attributes {stable_mosaic.version = 11 : i64} {
  func.func @_conv1x1_kernel_fused(%arg0: i32, %arg1: i32, %arg2: i32, %arg3: i32, %arg4: memref<1x4x256xf32, #tpu.memory_space<vmem>>, %arg5: memref<8x4xf32, #tpu.memory_space<vmem>>, %arg6: memref<8x1xf32, #tpu.memory_space<vmem>>, %arg7: memref<1x8x256xf32, #tpu.memory_space<vmem>>) attributes {dimension_semantics = [#tpu.dimension_semantics<parallel>, #tpu.dimension_semantics<parallel>, #tpu.dimension_semantics<parallel>, #tpu.dimension_semantics<arbitrary>], iteration_bounds = array<i64: 2, 1, 1, 1>, scalar_prefetch = 0 : i64, scratch_operands = 0 : i64, tpu.core_type = #tpu.core_type<tc>, window_params = [{transform_indices = @transform_0, window_bounds = array<i64: 1, 4, 256>}, {pipeline_mode = #tpu.pipeline_mode<synchronous>, transform_indices = @transform_1, window_bounds = array<i64: 8, 4>}, {pipeline_mode = #tpu.pipeline_mode<synchronous>, transform_indices = @transform_2, window_bounds = array<i64: 8, 1>}, {transform_indices = @transform_3, window_bounds = array<i64: 1, 8, 256>}]} {
    %c0 = arith.constant 0 : index
    %c0_0 = arith.constant 0 : index
    %0 = vector.load %arg5[%c0, %c0_0] : memref<8x4xf32, #tpu.memory_space<vmem>>, vector<8x4xf32>
    %c0_1 = arith.constant 0 : index
    %c0_2 = arith.constant 0 : index
    %c0_3 = arith.constant 0 : index
    %1 = vector.load %arg4[%c0_1, %c0_2, %c0_3] : memref<1x4x256xf32, #tpu.memory_space<vmem>>, vector<1x4x256xf32>
    %2 = vector.shape_cast %1 : vector<1x4x256xf32> to vector<4x256xf32>
    %cst = arith.constant dense<0.000000e+00> : vector<8x256xf32>
    %3 = tpu.matmul %0, %2, %cst {dimension_numbers = #tpu.dot_dimension_numbers<[1], [0], [0], [1], [0, 0, 1, 1], [], []>} : vector<8x4xf32>, vector<4x256xf32>, vector<8x256xf32> -> vector<8x256xf32>
    %c0_4 = arith.constant 0 : index
    %c0_5 = arith.constant 0 : index
    %4 = vector.load %arg6[%c0_4, %c0_5] : memref<8x1xf32, #tpu.memory_space<vmem>>, vector<8x1xf32>
    %5 = vector.broadcast %4 : vector<8x1xf32> to vector<8x256xf32>
    %6 = arith.addf %3, %5 : vector<8x256xf32>
    %c0_6 = arith.constant 0 : index
    %c0_7 = arith.constant 0 : index
    %c0_8 = arith.constant 0 : index
    %7 = vector.load %arg7[%c0_6, %c0_7, %c0_8] : memref<1x8x256xf32, #tpu.memory_space<vmem>>, vector<1x8x256xf32>
    %8 = vector.shape_cast %7 : vector<1x8x256xf32> to vector<8x256xf32>
    %9 = vector.shape_cast %6 : vector<8x256xf32> to vector<1x8x256xf32>
    tpu.vector_store %arg7[%c0_6, %c0_7, %c0_8], %9 {strides = array<i32>} : memref<1x8x256xf32, #tpu.memory_space<vmem>>, vector<1x8x256xf32>,
    return
  }
  func.func @transform_0(%arg0: i32, %arg1: i32, %arg2: i32, %arg3: i32) -> (i32, i32, i32) {
    %c0_i32 = arith.constant 0 : i32
    return %arg0, %arg3, %arg1 : i32, i32, i32
  }
  func.func @transform_1(%arg0: i32, %arg1: i32, %arg2: i32, %arg3: i32) -> (i32, i32) {
    %c0_i32 = arith.constant 0 : i32
    return %arg2, %arg3 : i32, i32
  }
  func.func @transform_2(%arg0: i32, %arg1: i32, %arg2: i32, %arg3: i32) -> (i32, i32) {
    %c0_i32 = arith.constant 0 : i32
    %c0_i32_0 = arith.constant 0 : i32
    return %arg2, %c0_i32 : i32, i32
  }
  func.func @transform_3(%arg0: i32, %arg1: i32, %arg2: i32, %arg3: i32) -> (i32, i32, i32) {
    %c0_i32 = arith.constant 0 : i32
    return %arg0, %arg2, %arg1 : i32, i32, i32
  }
}

module attributes {stable_mosaic.version = 11 : i64} {
  func.func @_conv1x1_kernel_fused(%arg0: i32, %arg1: i32, %arg2: i32, %arg3: i32, %arg4: memref<1x4x256xf32, #tpu.memory_space<vmem>>, %arg5: memref<8x4xf32, #tpu.memory_space<vmem>>, %arg6: memref<8x1xf32, #tpu.memory_space<vmem>>, %arg7: memref<1x8x256xf32, #tpu.memory_space<vmem>>) attributes {dimension_semantics = [#tpu.dimension_semantics<parallel>, #tpu.dimension_semantics<parallel>, #tpu.dimension_semantics<parallel>, #tpu.dimension_semantics<arbitrary>], iteration_bounds = array<i64: 2, 1, 1, 1>, scalar_prefetch = 0 : i64, scratch_operands = 0 : i64, tpu.core_type = #tpu.core_type<tc>, window_params = [{transform_indices = @transform_0, window_bounds = array<i64: 1, 4, 256>}, {transform_indices = @transform_1, window_bounds = array<i64: 8, 4>}, {transform_indices = @transform_2, window_bounds = array<i64: 8, 1>}, {transform_indices = @transform_3, window_bounds = array<i64: 1, 8, 256>}]} {
    %c0 = arith.constant 0 : index
    %c0_0 = arith.constant 0 : index
    %0 = vector.load %arg5[%c0, %c0_0] : memref<8x4xf32, #tpu.memory_space<vmem>>, vector<8x4xf32>
    %c0_1 = arith.constant 0 : index
    %c0_2 = arith.constant 0 : index
    %c0_3 = arith.constant 0 : index
    %1 = vector.load %arg4[%c0_1, %c0_2, %c0_3] : memref<1x4x256xf32, #tpu.memory_space<vmem>>, vector<1x4x256xf32>
    %2 = vector.shape_cast %1 : vector<1x4x256xf32> to vector<4x256xf32>
    %cst = arith.constant dense<0.000000e+00> : vector<8x256xf32>
    %3 = tpu.matmul %0, %2, %cst {dimension_numbers = #tpu.dot_dimension_numbers<[1], [0], [0], [1], [0, 0, 1, 1], [], []>} : vector<8x4xf32>, vector<4x256xf32>, vector<8x256xf32> -> vector<8x256xf32>
    %c0_4 = arith.constant 0 : index
    %c0_5 = arith.constant 0 : index
    %4 = vector.load %arg6[%c0_4, %c0_5] : memref<8x1xf32, #tpu.memory_space<vmem>>, vector<8x1xf32>
    %5 = vector.broadcast %4 : vector<8x1xf32> to vector<8x256xf32>
    %6 = arith.addf %3, %5 : vector<8x256xf32>
    %c0_6 = arith.constant 0 : index
    %c0_7 = arith.constant 0 : index
    %c0_8 = arith.constant 0 : index
    %7 = vector.load %arg7[%c0_6, %c0_7, %c0_8] : memref<1x8x256xf32, #tpu.memory_space<vmem>>, vector<1x8x256xf32>
    %8 = vector.shape_cast %7 : vector<1x8x256xf32> to vector<8x256xf32>
    %9 = vector.shape_cast %6 : vector<8x256xf32> to vector<1x8x256xf32>
    tpu.vector_store %arg7[%c0_6, %c0_7, %c0_8], %9 {strides = array<i32>} : memref<1x8x256xf32, #tpu.memory_space<vmem>>, vector<1x8x256xf32>,
    return
  }
  func.func @transform_0(%arg0: i32, %arg1: i32, %arg2: i32, %arg3: i32) -> (i32, i32, i32) {
    %c0_i32 = arith.constant 0 : i32
    return %arg0, %arg3, %arg1 : i32, i32, i32
  }
  func.func @transform_1(%arg0: i32, %arg1: i32, %arg2: i32, %arg3: i32) -> (i32, i32) {
    %c0_i32 = arith.constant 0 : i32
    return %arg2, %arg3 : i32, i32
  }
  func.func @transform_2(%arg0: i32, %arg1: i32, %arg2: i32, %arg3: i32) -> (i32, i32) {
    %c0_i32 = arith.constant 0 : i32
    %c0_i32_0 = arith.constant 0 : i32
    return %arg2, %c0_i32 : i32, i32
  }
  func.func @transform_3(%arg0: i32, %arg1: i32, %arg2: i32, %arg3: i32) -> (i32, i32, i32) {
    %c0_i32 = arith.constant 0 : i32
    return %arg0, %arg2, %arg1 : i32, i32, i32
  }
}

</mosaic_0001>

<llo_original>
// kernel: tpu_custom_call.1
$region0: #{tpu_custom_call.1}
  #allocation0 [shape = 'u32[]', space=smem, size = 0x4, offset = 0x4, fixed_abs, tag = 'smem constant byte address 0x4 - core index']
  #allocation1 [shape = 'u32[72,128]{1,0:T(1,128)}', space=vmem, size = 0x9000, scoped, tag = 'internal scratch']
  %s0 = inlined_call_operand.vmem [shape: f32[2,4,256], index: 0, kind: input, shape index: {}]
  %s1 = inlined_call_operand.vmem [shape: f32[8,4], index: 1, kind: input, shape index: {}]
  %s2 = inlined_call_operand.vmem [shape: f32[8,1], index: 2, kind: input, shape index: {}]
  %s3 = inlined_call_operand.hbm [shape: f32[2,8,256], index: 3, kind: output, shape index: {}]
  %s4 = sld [smem:[#allocation0]]
  $region45: #{tpu_custom_call.1} parent=0
    _
  %s6 = ssub.s32 1, %s4
  %s7 = scalar_select 0, %s6, %s4
  $region1: #{tpu_custom_call.1} parent=0
    #allocation2 [shape = 'u8[16384]{0}', space=vmem, size = 0x4000, scoped, tag = 'output window, operand 0']
    #allocation3 [shape = 's32[2]{0}', space=sflag, size = 0x8, scoped, tag = 'scoped memory for tpu_custom_call.1']
    %8 = vsyncpa [#allocation3], 0
    %s9 = scalar_lea.sflag [#allocation3], 1
    %10 = vsyncpa %s9, 0
    loop: start=0, step=1, limit=4
    $region2: #{tpu_custom_call.1} parent=1 // loop_pre_header
      _
    $region3: #{tpu_custom_call.1} parent=1 // loop_header
      %s12 = sphi 0, %s16
      %p13 = scmp.ge.s32.totalorder %s12, 4
      %s19 = sphi 0, %s45
      %s20 = sphi 0, %s41
      %s21 = sphi 0, %s37
      %s22 = sphi 0, %s33
      %s23 = sphi 0, %s19
      %s24 = sphi 0, %s20
      %s25 = sphi 0, %s21
      %s26 = sphi 0, %s22
      %s27 = sphi 0, %s23
      %s28 = sphi 0, %s24
      %s29 = sphi 0, %s25
      %s30 = sphi 0, %s26
      %s52 = sphi 0, %s54
      %s55 = sphi 0, %s52
      %s56 = sphi 0, %s55
      %s72 = sphi 0, %s56
      %s80 = sphi 0, %s82
      %s83 = sphi 0, %s80
      %s84 = sphi 0, %s83
      %s100 = sphi 0, %s84
      %s106 = sphi 0, %s108
      %s109 = sphi 0, %s106
      %s110 = sphi 0, %s109
      %s126 = sphi 0, %s110
      %s136 = sphi 0, %s138
      %s139 = sphi 0, %s136
      %s140 = sphi 0, %s139
      %s156 = sphi 0, %s140
    $region4: #{tpu_custom_call.1} parent=1 // loop_header_branch
      %15 = sbr.rel (%p13) target = $region8
    $region5: #{tpu_custom_call.1} parent=1 // loop_body
      %s17 = ssub.s32 %s12, 1
      %s18 = ssub.s32 %s12, 2
      %s31 = sadd.s32 1, %s22
      %p32 = scmp.ge.s32.totalorder %s31, 1
      %s33 = scalar_select %p32, 0, %s31
      %s34 = sadd.s32 1, %s21
      %s35 = scalar_select %p32, %s34, %s21
      %p36 = scmp.ge.s32.totalorder %s35, 1
      %s37 = scalar_select %p36, 0, %s35
      %s38 = sadd.s32 1, %s20
      %s39 = scalar_select %p36, %s38, %s20
      %p40 = scmp.ge.s32.totalorder %s39, 1
      %s41 = scalar_select %p40, 0, %s39
      %s42 = sadd.s32 1, %s19
      %s43 = scalar_select %p40, %s42, %s19
      %p44 = scmp.ge.s32.totalorder %s43, 2
      %s45 = scalar_select %p44, 0, %s43
      %s46 = ssub.s32 %s19, %s45
      %s47 = ssub.s32 %s22, %s33
      %s48 = sor.u32 %s46, %s47
      %s49 = ssub.s32 %s20, %s41
      %s50 = sor.u32 %s48, %s49
      %p51 = scmp.eq.s32.totalorder %s50, 0
      %s53 = sadd.s32 %s52, 1
      %s54 = scalar_select %p51, %s52, %s53
      %p57 = pneg %p51
      %p58 = scmp.eq.s32.totalorder %s12, 1
      %p59 = por %p57, %p58
      %p60 = scmp.ne.s32.totalorder %s52, %s55
      %p61 = scmp.eq.s32.totalorder %s12, 0
      %p62 = por %p60, %p61
      %p63 = scmp.ne.s32.totalorder %s52, %s55
      %p64 = scmp.eq.s32.totalorder %s17, 1
      %p65 = por %p63, %p64
      %p66 = scmp.ne.s32.totalorder %s55, %s56
      %p67 = scmp.eq.s32.totalorder %s17, 0
      %p68 = por %p66, %p67
      %p69 = scmp.ne.s32.totalorder %s55, %s56
      %p70 = scmp.eq.s32.totalorder %s18, 1
      %p71 = por %p69, %p70
      %p73 = scmp.ne.s32.totalorder %s56, %s72
      %p74 = scmp.eq.s32.totalorder %s18, 0
      %p75 = por %p73, %p74
      %s76 = ssub.s32 %s21, %s37
      %s77 = ssub.s32 %s22, %s33
      %s78 = sor.u32 %s76, %s77
      %p79 = scmp.eq.s32.totalorder %s78, 0
      %s81 = sadd.s32 %s80, 1
      %s82 = scalar_select %p79, %s80, %s81
      %p85 = pneg %p79
      %p86 = scmp.eq.s32.totalorder %s12, 1
      %p87 = por %p85, %p86
      %p88 = scmp.ne.s32.totalorder %s80, %s83
      %p89 = scmp.eq.s32.totalorder %s12, 0
      %p90 = por %p88, %p89
      %p91 = scmp.ne.s32.totalorder %s80, %s83
      %p92 = scmp.eq.s32.totalorder %s17, 1
      %p93 = por %p91, %p92
      %p94 = scmp.ne.s32.totalorder %s83, %s84
      %p95 = scmp.eq.s32.totalorder %s17, 0
      %p96 = por %p94, %p95
      %p97 = scmp.ne.s32.totalorder %s83, %s84
      %p98 = scmp.eq.s32.totalorder %s18, 1
      %p99 = por %p97, %p98
      %p101 = scmp.ne.s32.totalorder %s84, %s100
      %p102 = scmp.eq.s32.totalorder %s18, 0
      %p103 = por %p101, %p102
      %s104 = ssub.s32 %s21, %s37
      %p105 = scmp.eq.s32.totalorder %s104, 0
      %s107 = sadd.s32 %s106, 1
      %s108 = scalar_select %p105, %s106, %s107
      %p111 = pneg %p105
      %p112 = scmp.eq.s32.totalorder %s12, 1
      %p113 = por %p111, %p112
      %p114 = scmp.ne.s32.totalorder %s106, %s109
      %p115 = scmp.eq.s32.totalorder %s12, 0
      %p116 = por %p114, %p115
      %p117 = scmp.ne.s32.totalorder %s106, %s109
      %p118 = scmp.eq.s32.totalorder %s17, 1
      %p119 = por %p117, %p118
      %p120 = scmp.ne.s32.totalorder %s109, %s110
      %p121 = scmp.eq.s32.totalorder %s17, 0
      %p122 = por %p120, %p121
      %p123 = scmp.ne.s32.totalorder %s109, %s110
      %p124 = scmp.eq.s32.totalorder %s18, 1
      %p125 = por %p123, %p124
      %p127 = scmp.ne.s32.totalorder %s110, %s126
      %p128 = scmp.eq.s32.totalorder %s18, 0
      %p129 = por %p127, %p128
      %s130 = ssub.s32 %s19, %s45
      %s131 = ssub.s32 %s21, %s37
      %s132 = sor.u32 %s130, %s131
      %s133 = ssub.s32 %s20, %s41
      %s134 = sor.u32 %s132, %s133
      %p135 = scmp.eq.s32.totalorder %s134, 0
      %s137 = sadd.s32 %s136, 1
      %s138 = scalar_select %p135, %s136, %s137
      %p141 = pneg %p135
      %p142 = scmp.eq.s32.totalorder %s12, 1
      %p143 = por %p141, %p142
      %p144 = scmp.ne.s32.totalorder %s136, %s139
      %p145 = scmp.eq.s32.totalorder %s12, 0
      %p146 = por %p144, %p145
      %p147 = scmp.ne.s32.totalorder %s136, %s139
      %p148 = scmp.eq.s32.totalorder %s17, 1
      %p149 = por %p147, %p148
      %p150 = scmp.ne.s32.totalorder %s139, %s140
      %p151 = scmp.eq.s32.totalorder %s17, 0
      %p152 = por %p150, %p151
      %p153 = scmp.ne.s32.totalorder %s139, %s140
      %p154 = scmp.eq.s32.totalorder %s18, 1
      %p155 = por %p153, %p154
      %p157 = scmp.ne.s32.totalorder %s140, %s156
      %p158 = scmp.eq.s32.totalorder %s18, 0
      %p159 = por %p157, %p158
      %p160 = scmp.le.s32.totalorder 1, %s12
      %p161 = scmp.lt.s32.totalorder %s12, 3
      %p162 = pnand %p160, %p161
      %p163 = pneg %p162
      // Predicated region
      $region9: #{tpu_custom_call.1} parent=5 // pred_check
        _
      $region10: #{tpu_custom_call.1} parent=5 // pred_check_branch
        %165 = sbr.rel (%p162) target = $region12
      $region11: #{tpu_custom_call.1} parent=5 // pred_region
        %s166 = ssub.s32 %s12, 1
        // Predicated region
        $region13: #{tpu_custom_call.1} parent=11 // pred_check
          %p167 = pneg %p96
        $region14: #{tpu_custom_call.1} parent=11 // pred_check_branch
          %169 = sbr.rel (%p167) target = $region16
        $region15: #{tpu_custom_call.1} parent=11 // pred_region
          %p170 = scmp.lt.s32.totalorder %s25, 0
          %s171 = scalar_select %p170, %s25, 0
          %p172 = scmp.lt.s32.totalorder %s26, 0
          %s173 = scalar_select %p172, %s26, 0
          %s174 = sadd.s32 %s173, %s171
          %s175 = smul.addr %s174, 8
          %s176 = scalar_lea.vmem %s1, %s175
        $region16: #{tpu_custom_call.1} parent=11 // pred_fallthru
          _
        // Predicated region
        $region17: #{tpu_custom_call.1} parent=11 // pred_check
          %p177 = pneg %p122
        $region18: #{tpu_custom_call.1} parent=11 // pred_check_branch
          %179 = sbr.rel (%p177) target = $region20
        $region19: #{tpu_custom_call.1} parent=11 // pred_region
          %p180 = scmp.lt.s32.totalorder %s25, 0
          %s181 = scalar_select %p180, %s25, 0
          %s182 = smul.addr %s181, 8
          %s183 = scalar_lea.vmem %s2, %s182
        $region20: #{tpu_custom_call.1} parent=11 // pred_fallthru
          _
      $region12: #{tpu_custom_call.1} parent=5 // pred_fallthru
        _
      %p184 = scmp.lt.s32.totalorder %s12, 2
      // Predicated region
      $region21: #{tpu_custom_call.1} parent=5 // pred_check
        %p185 = pneg %p184
      $region22: #{tpu_custom_call.1} parent=5 // pred_check_branch
        %187 = sbr.rel (%p185) target = $region24
      $region23: #{tpu_custom_call.1} parent=5 // pred_region
        // Predicated region
        $region25: #{tpu_custom_call.1} parent=23 // pred_check
          %p188 = pneg %p62
        $region26: #{tpu_custom_call.1} parent=23 // pred_check_branch
          %190 = sbr.rel (%p188) target = $region28
        $region27: #{tpu_custom_call.1} parent=23 // pred_region
          %s191 = smul.u32 2, %s20
          %p192 = scmp.lt.s32.totalorder %s19, 1
          %s193 = scalar_select %p192, %s19, 1
          %p194 = scmp.lt.s32.totalorder %s22, 0
          %s195 = scalar_select %p194, %s22, 0
          %p196 = scmp.lt.s32.totalorder %s191, 1
          %s197 = scalar_select %p196, %s191, 1
          %s198 = smul.addr %s195, 2
          %s199 = sadd.s32 %s197, %s198
          %s200 = smul.addr %s193, 2
          %s201 = sadd.s32 %s199, %s200
          %s202 = smul.addr %s201, 4
          %s203 = scalar_lea.vmem %s0, %s202
          %s204 = smul.u32 2, %s20
        $region28: #{tpu_custom_call.1} parent=23 // pred_fallthru
          _
      $region24: #{tpu_custom_call.1} parent=5 // pred_fallthru
        _
      %p205 = scmp.le.s32.totalorder 1, %s12
      %p206 = scmp.lt.s32.totalorder %s12, 3
      %p207 = pnand %p205, %p206
      %p208 = pneg %p207
      // Predicated region
      $region29: #{tpu_custom_call.1} parent=5 // pred_check
        _
      $region30: #{tpu_custom_call.1} parent=5 // pred_check_branch
        %210 = sbr.rel (%p207) target = $region32
      $region31: #{tpu_custom_call.1} parent=5 // pred_region
        %s211 = ssub.s32 %s12, 1
        %s212 = smul.u32 2, %s24
        %p213 = scmp.lt.s32.totalorder %s23, 1
        %s214 = scalar_select %p213, %s23, 1
        %p215 = scmp.lt.s32.totalorder %s26, 0
        %s216 = scalar_select %p215, %s26, 0
        %p217 = scmp.lt.s32.totalorder %s212, 1
        %s218 = scalar_select %p217, %s212, 1
        %s219 = smul.addr %s216, 2
        %s220 = sadd.s32 %s218, %s219
        %s221 = smul.addr %s214, 2
        %s222 = sadd.s32 %s220, %s221
        %s223 = smul.addr %s222, 4
        %s224 = scalar_lea.vmem %s0, %s223
        %p225 = pneg %p68
        %p226 = pneg %p65
        %p227 = scmp.lt.s32.totalorder %s25, 0
        %s228 = scalar_select %p227, %s25, 0
        %p229 = scmp.lt.s32.totalorder %s26, 0
        %s230 = scalar_select %p229, %s26, 0
        %s231 = sadd.s32 %s230, %s228
        %s232 = smul.addr %s231, 8
        %s233 = scalar_lea.vmem %s1, %s232
        %p234 = pneg %p96
        %p235 = pneg %p93
        %p236 = scmp.lt.s32.totalorder %s25, 0
        %s237 = scalar_select %p236, %s25, 0
        %s238 = smul.addr %s237, 8
        %s239 = scalar_lea.vmem %s2, %s238
        %p240 = pneg %p122
        %p241 = pneg %p119
        %p242 = pneg %p152
        %p243 = pneg %p149
        %s244 = sand.u32 %s139, 1
        %s245 = scalar_lea.sflag [#allocation3], %s244
        %s246 = sand.u32 %s139, 1
        %s247 = smul.addr %s246, 16
        %s248 = scalar_lea.vmem [#allocation2], %s247
        %s249 = smul.u32 2, %s24
        %p250 = scmp.lt.s32.totalorder %s23, 1
        %s251 = scalar_select %p250, %s23, 1
        %p252 = scmp.lt.s32.totalorder %s26, 0
        %s253 = scalar_select %p252, %s26, 0
        %p254 = scmp.lt.s32.totalorder %s249, 1
        %s255 = scalar_select %p254, %s249, 1
        %s256 = smul.addr %s253, 2
        %s257 = sadd.s32 %s255, %s256
        %s258 = smul.addr %s251, 2
        %s259 = sadd.s32 %s257, %s258
        %s260 = smul.addr %s259, 4
        %s261 = scalar_lea.vmem %s0, %s260
        %s262 = smul.u32 2, %s24
        %p263 = scmp.lt.s32.totalorder %s25, 0
        %s264 = scalar_select %p263, %s25, 0
        %p265 = scmp.lt.s32.totalorder %s26, 0
        %s266 = scalar_select %p265, %s26, 0
        %s267 = sadd.s32 %s266, %s264
        %s268 = smul.addr %s267, 8
        %s269 = scalar_lea.vmem %s1, %s268
        %p270 = scmp.lt.s32.totalorder %s25, 0
        %s271 = scalar_select %p270, %s25, 0
        %s272 = smul.addr %s271, 8
        %s273 = scalar_lea.vmem %s2, %s272
        %s274 = smul.u32 2, %s24
        %v275 = vld [vmem:[%s269] sm:$0xff]
        %v276 = vld [vmem:[%s261] sm:$0xff]
        %v277 = vld [vmem:[%s273] sm:$0xff]
        %279 = vset.pattern.permute.xlu0 0
        %280 = vperm.xlu0 %279, %v277
        %v281 = vpop.permute.xlu0 %280
        %284 = vst [vmem:[#allocation1] ss:$2 sm:$0xff] %v276
        %v285 = vld.sshfl [vmem:[#allocation1] sm:$0xff pattern:$0x75316420]
        %v286 = vld.sshfl [vmem:[#allocation1 + $0x8] sm:$0xff pattern:$0x75316420]
        %vm287 = vcmask 31744
        %v289 = vsel %vm287, %v275, 0
        %vm291 = vcmask 1043456
        %v292 = vsel %vm291, %v285, 0
        %v294 = vsel %vm291, %v286, 0
        %296 = vmatpush.msra.mxu0 0.0
        %297 = vmatpush.msra.mxu0 0.0
        %298 = vmatpush.msra.mxu0 0.0
        %299 = vmatpush.msra.mxu0 0.0
        %300 = vmatpush.msra.mxu0 0.0
        %301 = vmatpush.msra.mxu0 0.0
        %302 = vmatpush.msra.mxu0 0.0
        %303 = vmatpush.msra.mxu0 0.0
        %304 = vmatpush.msra.mxu0 0.0
        %305 = vmatpush.msra.mxu0 0.0
        %306 = vmatpush.msra.mxu0 0.0
        %307 = vmatpush.msra.mxu0 0.0
        %308 = vmatpush.msra.mxu0 0.0
        %309 = vmatpush.msra.mxu0 0.0
        %310 = vmatpush.msra.mxu0 0.0
        %311 = vmatpush.msra.mxu0 %v292
        %312 = vmatmul.f32.gmra.mxu0 %v289
        %v313 = vpop.f32.mrf.mxu0
        %v314 = vadd.f32 %v281, %v313
        %315 = vdwg.mxu0
        %316 = vmatpush.msra.mxu0 0.0
        %317 = vmatpush.msra.mxu0 0.0
        %318 = vmatpush.msra.mxu0 0.0
        %319 = vmatpush.msra.mxu0 0.0
        %320 = vmatpush.msra.mxu0 0.0
        %321 = vmatpush.msra.mxu0 0.0
        %322 = vmatpush.msra.mxu0 0.0
        %323 = vmatpush.msra.mxu0 0.0
        %324 = vmatpush.msra.mxu0 0.0
        %325 = vmatpush.msra.mxu0 0.0
        %326 = vmatpush.msra.mxu0 0.0
        %327 = vmatpush.msra.mxu0 0.0
        %328 = vmatpush.msra.mxu0 0.0
        %329 = vmatpush.msra.mxu0 0.0
        %330 = vmatpush.msra.mxu0 0.0
        %331 = vmatpush.msra.mxu0 %v294
        %332 = vmatmul.f32.gmra.mxu0 %v289
        %v333 = vpop.f32.mrf.mxu0
        %v334 = vadd.f32 %v281, %v333
        %335 = vdwg.mxu0
        %336 = vst [vmem:[%s248] sm:$0xff] %v314
        %337 = vst [vmem:[%s248 + $0x8] sm:$0xff] %v334
        %s338 = sand.u32 %s139, 1
        %s339 = scalar_lea.sflag [#allocation3], %s338
        %s340 = sand.u32 %s139, 1
        %s341 = smul.addr %s340, 16
        %s342 = scalar_lea.vmem [#allocation2], %s341
        // Predicated region
        $region33: #{tpu_custom_call.1} parent=31 // pred_check
          %p343 = pneg %p149
        $region34: #{tpu_custom_call.1} parent=31 // pred_check_branch
          %345 = sbr.rel (%p343) target = $region36
        $region35: #{tpu_custom_call.1} parent=31 // pred_region
          %s346 = smul.u32 2, %s24
          %348 = vsyncadd %s339, 0
          %s349 = smul.addr %s25, 2
          %s350 = sadd.s32 %s346, %s349
          %s351 = smul.addr %s23, 2
          %s352 = sadd.s32 %s350, %s351
          %s353 = smul.addr %s352, 8
          %s354 = scalar_lea.hbm %s3, %s353
          %s356 = sshll.u32 %s342, 4
          %s357 = int_to_ptr.vmem [resolvable:$true] %s356
          %s358 = sshll.u32 %s354, 4
          %s359 = int_to_ptr.hbm [resolvable:$true] %s358
          %361 = dma.vmem_to_hbm [thread:$0]  %s357, 256, %s359, %s339
        $region36: #{tpu_custom_call.1} parent=31 // pred_fallthru
          _
      $region32: #{tpu_custom_call.1} parent=5 // pred_fallthru
        _
      %p362 = scmp.le.s32.totalorder 2, %s12
      // Predicated region
      $region37: #{tpu_custom_call.1} parent=5 // pred_check
        %p363 = pneg %p362
      $region38: #{tpu_custom_call.1} parent=5 // pred_check_branch
        %365 = sbr.rel (%p363) target = $region40
      $region39: #{tpu_custom_call.1} parent=5 // pred_region
        %s366 = ssub.s32 %s12, 2
        // Predicated region
        $region41: #{tpu_custom_call.1} parent=39 // pred_check
          %p367 = pneg %p155
        $region42: #{tpu_custom_call.1} parent=39 // pred_check_branch
          %369 = sbr.rel (%p367) target = $region44
        $region43: #{tpu_custom_call.1} parent=39 // pred_region
          %s370 = sand.u32 %s140, 1
          %s371 = scalar_lea.sflag [#allocation3], %s370
          %s372 = sand.u32 %s140, 1
          %s373 = smul.addr %s372, 16
          %s374 = scalar_lea.vmem [#allocation2], %s373
          %376 = dma.done %s371, 256
        $region44: #{tpu_custom_call.1} parent=39 // pred_fallthru
          _
      $region40: #{tpu_custom_call.1} parent=5 // pred_fallthru
        _
    $region6: #{tpu_custom_call.1} parent=1 // loop_footer
      %s16 = sadd.s32 1, %s12
    $region7: #{tpu_custom_call.1} parent=1 // loop_footer_branch
      %11 = sbr.rel target = $region3
    $region8: #{tpu_custom_call.1} parent=1 // loop_exit
      _
    %377 = vsyncpa [#allocation3], 1
    %s378 = scalar_lea.sflag [#allocation3], 1
    %379 = vsyncpa %s378, 1

// kernel: tpu_custom_call.1
$region0: #{tpu_custom_call.1}
  #allocation0 [shape = 'u32[]', space=smem, size = 0x4, offset = 0x4, fixed_abs, tag = 'smem constant byte address 0x4 - core index']
  #allocation1 [shape = 'u32[72,128]{1,0:T(1,128)}', space=vmem, size = 0x9000, scoped, tag = 'internal scratch']
  %s0 = inlined_call_operand.vmem [shape: f32[2,4,256], index: 0, kind: input, shape index: {}]
  %s1 = inlined_call_operand.vmem [shape: f32[8,4], index: 1, kind: input, shape index: {}]
  %s2 = inlined_call_operand.vmem [shape: f32[8,1], index: 2, kind: input, shape index: {}]
  %s3 = inlined_call_operand.hbm [shape: f32[2,8,256], index: 3, kind: output, shape index: {}]
  %s4 = sld [smem:[#allocation0]]
  $region45: #{tpu_custom_call.1} parent=0
    _
  %s6 = ssub.s32 1, %s4
  %s7 = scalar_select 0, %s6, %s4
  $region1: #{tpu_custom_call.1} parent=0
    #allocation2 [shape = 'u8[16384]{0}', space=vmem, size = 0x4000, scoped, tag = 'output window, operand 0']
    #allocation3 [shape = 's32[2]{0}', space=sflag, size = 0x8, scoped, tag = 'scoped memory for tpu_custom_call.1']
    %8 = vsyncpa [#allocation3], 0
    %s9 = scalar_lea.sflag [#allocation3], 1
    %10 = vsyncpa %s9, 0
    loop: start=0, step=1, limit=4
    $region2: #{tpu_custom_call.1} parent=1 // loop_pre_header
      _
    $region3: #{tpu_custom_call.1} parent=1 // loop_header
      %s12 = sphi 0, %s16
      %p13 = scmp.ge.s32.totalorder %s12, 4
      %s19 = sphi 0, %s45
      %s20 = sphi 0, %s41
      %s21 = sphi 0, %s37
      %s22 = sphi 0, %s33
      %s23 = sphi 0, %s19
      %s24 = sphi 0, %s20
      %s25 = sphi 0, %s21
      %s26 = sphi 0, %s22
      %s27 = sphi 0, %s23
      %s28 = sphi 0, %s24
      %s29 = sphi 0, %s25
      %s30 = sphi 0, %s26
      %s52 = sphi 0, %s54
      %s55 = sphi 0, %s52
      %s56 = sphi 0, %s55
      %s72 = sphi 0, %s56
      %s80 = sphi 0, %s82
      %s83 = sphi 0, %s80
      %s84 = sphi 0, %s83
      %s100 = sphi 0, %s84
      %s106 = sphi 0, %s108
      %s109 = sphi 0, %s106
      %s110 = sphi 0, %s109
      %s126 = sphi 0, %s110
      %s136 = sphi 0, %s138
      %s139 = sphi 0, %s136
      %s140 = sphi 0, %s139
      %s156 = sphi 0, %s140
    $region4: #{tpu_custom_call.1} parent=1 // loop_header_branch
      %15 = sbr.rel (%p13) target = $region8
    $region5: #{tpu_custom_call.1} parent=1 // loop_body
      %s17 = ssub.s32 %s12, 1
      %s18 = ssub.s32 %s12, 2
      %s31 = sadd.s32 1, %s22
      %p32 = scmp.ge.s32.totalorder %s31, 1
      %s33 = scalar_select %p32, 0, %s31
      %s34 = sadd.s32 1, %s21
      %s35 = scalar_select %p32, %s34, %s21
      %p36 = scmp.ge.s32.totalorder %s35, 1
      %s37 = scalar_select %p36, 0, %s35
      %s38 = sadd.s32 1, %s20
      %s39 = scalar_select %p36, %s38, %s20
      %p40 = scmp.ge.s32.totalorder %s39, 1
      %s41 = scalar_select %p40, 0, %s39
      %s42 = sadd.s32 1, %s19
      %s43 = scalar_select %p40, %s42, %s19
      %p44 = scmp.ge.s32.totalorder %s43, 2
      %s45 = scalar_select %p44, 0, %s43
      %s46 = ssub.s32 %s19, %s45
      %s47 = ssub.s32 %s22, %s33
      %s48 = sor.u32 %s46, %s47
      %s49 = ssub.s32 %s20, %s41
      %s50 = sor.u32 %s48, %s49
      %p51 = scmp.eq.s32.totalorder %s50, 0
      %s53 = sadd.s32 %s52, 1
      %s54 = scalar_select %p51, %s52, %s53
      %p57 = pneg %p51
      %p58 = scmp.eq.s32.totalorder %s12, 1
      %p59 = por %p57, %p58
      %p60 = scmp.ne.s32.totalorder %s52, %s55
      %p61 = scmp.eq.s32.totalorder %s12, 0
      %p62 = por %p60, %p61
      %p63 = scmp.ne.s32.totalorder %s52, %s55
      %p64 = scmp.eq.s32.totalorder %s17, 1
      %p65 = por %p63, %p64
      %p66 = scmp.ne.s32.totalorder %s55, %s56
      %p67 = scmp.eq.s32.totalorder %s17, 0
      %p68 = por %p66, %p67
      %p69 = scmp.ne.s32.totalorder %s55, %s56
      %p70 = scmp.eq.s32.totalorder %s18, 1
      %p71 = por %p69, %p70
      %p73 = scmp.ne.s32.totalorder %s56, %s72
      %p74 = scmp.eq.s32.totalorder %s18, 0
      %p75 = por %p73, %p74
      %s76 = ssub.s32 %s21, %s37
      %s77 = ssub.s32 %s22, %s33
      %s78 = sor.u32 %s76, %s77
      %p79 = scmp.eq.s32.totalorder %s78, 0
      %s81 = sadd.s32 %s80, 1
      %s82 = scalar_select %p79, %s80, %s81
      %p85 = pneg %p79
      %p86 = scmp.eq.s32.totalorder %s12, 1
      %p87 = por %p85, %p86
      %p88 = scmp.ne.s32.totalorder %s80, %s83
      %p89 = scmp.eq.s32.totalorder %s12, 0
      %p90 = por %p88, %p89
      %p91 = scmp.ne.s32.totalorder %s80, %s83
      %p92 = scmp.eq.s32.totalorder %s17, 1
      %p93 = por %p91, %p92
      %p94 = scmp.ne.s32.totalorder %s83, %s84
      %p95 = scmp.eq.s32.totalorder %s17, 0
      %p96 = por %p94, %p95
      %p97 = scmp.ne.s32.totalorder %s83, %s84
      %p98 = scmp.eq.s32.totalorder %s18, 1
      %p99 = por %p97, %p98
      %p101 = scmp.ne.s32.totalorder %s84, %s100
      %p102 = scmp.eq.s32.totalorder %s18, 0
      %p103 = por %p101, %p102
      %s104 = ssub.s32 %s21, %s37
      %p105 = scmp.eq.s32.totalorder %s104, 0
      %s107 = sadd.s32 %s106, 1
      %s108 = scalar_select %p105, %s106, %s107
      %p111 = pneg %p105
      %p112 = scmp.eq.s32.totalorder %s12, 1
      %p113 = por %p111, %p112
      %p114 = scmp.ne.s32.totalorder %s106, %s109
      %p115 = scmp.eq.s32.totalorder %s12, 0
      %p116 = por %p114, %p115
      %p117 = scmp.ne.s32.totalorder %s106, %s109
      %p118 = scmp.eq.s32.totalorder %s17, 1
      %p119 = por %p117, %p118
      %p120 = scmp.ne.s32.totalorder %s109, %s110
      %p121 = scmp.eq.s32.totalorder %s17, 0
      %p122 = por %p120, %p121
      %p123 = scmp.ne.s32.totalorder %s109, %s110
      %p124 = scmp.eq.s32.totalorder %s18, 1
      %p125 = por %p123, %p124
      %p127 = scmp.ne.s32.totalorder %s110, %s126
      %p128 = scmp.eq.s32.totalorder %s18, 0
      %p129 = por %p127, %p128
      %s130 = ssub.s32 %s19, %s45
      %s131 = ssub.s32 %s21, %s37
      %s132 = sor.u32 %s130, %s131
      %s133 = ssub.s32 %s20, %s41
      %s134 = sor.u32 %s132, %s133
      %p135 = scmp.eq.s32.totalorder %s134, 0
      %s137 = sadd.s32 %s136, 1
      %s138 = scalar_select %p135, %s136, %s137
      %p141 = pneg %p135
      %p142 = scmp.eq.s32.totalorder %s12, 1
      %p143 = por %p141, %p142
      %p144 = scmp.ne.s32.totalorder %s136, %s139
      %p145 = scmp.eq.s32.totalorder %s12, 0
      %p146 = por %p144, %p145
      %p147 = scmp.ne.s32.totalorder %s136, %s139
      %p148 = scmp.eq.s32.totalorder %s17, 1
      %p149 = por %p147, %p148
      %p150 = scmp.ne.s32.totalorder %s139, %s140
      %p151 = scmp.eq.s32.totalorder %s17, 0
      %p152 = por %p150, %p151
      %p153 = scmp.ne.s32.totalorder %s139, %s140
      %p154 = scmp.eq.s32.totalorder %s18, 1
      %p155 = por %p153, %p154
      %p157 = scmp.ne.s32.totalorder %s140, %s156
      %p158 = scmp.eq.s32.totalorder %s18, 0
      %p159 = por %p157, %p158
      %p160 = scmp.le.s32.totalorder 1, %s12
      %p161 = scmp.lt.s32.totalorder %s12, 3
      %p162 = pnand %p160, %p161
      %p163 = pneg %p162
      // Predicated region
      $region9: #{tpu_custom_call.1} parent=5 // pred_check
        _
      $region10: #{tpu_custom_call.1} parent=5 // pred_check_branch
        %165 = sbr.rel (%p162) target = $region12
      $region11: #{tpu_custom_call.1} parent=5 // pred_region
        %s166 = ssub.s32 %s12, 1
        // Predicated region
        $region13: #{tpu_custom_call.1} parent=11 // pred_check
          %p167 = pneg %p96
        $region14: #{tpu_custom_call.1} parent=11 // pred_check_branch
          %169 = sbr.rel (%p167) target = $region16
        $region15: #{tpu_custom_call.1} parent=11 // pred_region
          %p170 = scmp.lt.s32.totalorder %s25, 0
          %s171 = scalar_select %p170, %s25, 0
          %p172 = scmp.lt.s32.totalorder %s26, 0
          %s173 = scalar_select %p172, %s26, 0
          %s174 = sadd.s32 %s173, %s171
          %s175 = smul.addr %s174, 8
          %s176 = scalar_lea.vmem %s1, %s175
        $region16: #{tpu_custom_call.1} parent=11 // pred_fallthru
          _
        // Predicated region
        $region17: #{tpu_custom_call.1} parent=11 // pred_check
          %p177 = pneg %p122
        $region18: #{tpu_custom_call.1} parent=11 // pred_check_branch
          %179 = sbr.rel (%p177) target = $region20
        $region19: #{tpu_custom_call.1} parent=11 // pred_region
          %p180 = scmp.lt.s32.totalorder %s25, 0
          %s181 = scalar_select %p180, %s25, 0
          %s182 = smul.addr %s181, 8
          %s183 = scalar_lea.vmem %s2, %s182
        $region20: #{tpu_custom_call.1} parent=11 // pred_fallthru
          _
      $region12: #{tpu_custom_call.1} parent=5 // pred_fallthru
        _
      %p184 = scmp.lt.s32.totalorder %s12, 2
      // Predicated region
      $region21: #{tpu_custom_call.1} parent=5 // pred_check
        %p185 = pneg %p184
      $region22: #{tpu_custom_call.1} parent=5 // pred_check_branch
        %187 = sbr.rel (%p185) target = $region24
      $region23: #{tpu_custom_call.1} parent=5 // pred_region
        // Predicated region
        $region25: #{tpu_custom_call.1} parent=23 // pred_check
          %p188 = pneg %p62
        $region26: #{tpu_custom_call.1} parent=23 // pred_check_branch
          %190 = sbr.rel (%p188) target = $region28
        $region27: #{tpu_custom_call.1} parent=23 // pred_region
          %s191 = smul.u32 2, %s20
          %p192 = scmp.lt.s32.totalorder %s19, 1
          %s193 = scalar_select %p192, %s19, 1
          %p194 = scmp.lt.s32.totalorder %s22, 0
          %s195 = scalar_select %p194, %s22, 0
          %p196 = scmp.lt.s32.totalorder %s191, 1
          %s197 = scalar_select %p196, %s191, 1
          %s198 = smul.addr %s195, 2
          %s199 = sadd.s32 %s197, %s198
          %s200 = smul.addr %s193, 2
          %s201 = sadd.s32 %s199, %s200
          %s202 = smul.addr %s201, 4
          %s203 = scalar_lea.vmem %s0, %s202
          %s204 = smul.u32 2, %s20
        $region28: #{tpu_custom_call.1} parent=23 // pred_fallthru
          _
      $region24: #{tpu_custom_call.1} parent=5 // pred_fallthru
        _
      %p205 = scmp.le.s32.totalorder 1, %s12
      %p206 = scmp.lt.s32.totalorder %s12, 3
      %p207 = pnand %p205, %p206
      %p208 = pneg %p207
      // Predicated region
      $region29: #{tpu_custom_call.1} parent=5 // pred_check
        _
      $region30: #{tpu_custom_call.1} parent=5 // pred_check_branch
        %210 = sbr.rel (%p207) target = $region32
      $region31: #{tpu_custom_call.1} parent=5 // pred_region
        %s211 = ssub.s32 %s12, 1
        %s212 = smul.u32 2, %s24
        %p213 = scmp.lt.s32.totalorder %s23, 1
        %s214 = scalar_select %p213, %s23, 1
        %p215 = scmp.lt.s32.totalorder %s26, 0
        %s216 = scalar_select %p215, %s26, 0
        %p217 = scmp.lt.s32.totalorder %s212, 1
        %s218 = scalar_select %p217, %s212, 1
        %s219 = smul.addr %s216, 2
        %s220 = sadd.s32 %s218, %s219
        %s221 = smul.addr %s214, 2
        %s222 = sadd.s32 %s220, %s221
        %s223 = smul.addr %s222, 4
        %s224 = scalar_lea.vmem %s0, %s223
        %p225 = pneg %p68
        %p226 = pneg %p65
        %p227 = scmp.lt.s32.totalorder %s25, 0
        %s228 = scalar_select %p227, %s25, 0
        %p229 = scmp.lt.s32.totalorder %s26, 0
        %s230 = scalar_select %p229, %s26, 0
        %s231 = sadd.s32 %s230, %s228
        %s232 = smul.addr %s231, 8
        %s233 = scalar_lea.vmem %s1, %s232
        %p234 = pneg %p96
        %p235 = pneg %p93
        %p236 = scmp.lt.s32.totalorder %s25, 0
        %s237 = scalar_select %p236, %s25, 0
        %s238 = smul.addr %s237, 8
        %s239 = scalar_lea.vmem %s2, %s238
        %p240 = pneg %p122
        %p241 = pneg %p119
        %p242 = pneg %p152
        %p243 = pneg %p149
        %s244 = sand.u32 %s139, 1
        %s245 = scalar_lea.sflag [#allocation3], %s244
        %s246 = sand.u32 %s139, 1
        %s247 = smul.addr %s246, 16
        %s248 = scalar_lea.vmem [#allocation2], %s247
        %s249 = smul.u32 2, %s24
        %p250 = scmp.lt.s32.totalorder %s23, 1
        %s251 = scalar_select %p250, %s23, 1
        %p252 = scmp.lt.s32.totalorder %s26, 0
        %s253 = scalar_select %p252, %s26, 0
        %p254 = scmp.lt.s32.totalorder %s249, 1
        %s255 = scalar_select %p254, %s249, 1
        %s256 = smul.addr %s253, 2
        %s257 = sadd.s32 %s255, %s256
        %s258 = smul.addr %s251, 2
        %s259 = sadd.s32 %s257, %s258
        %s260 = smul.addr %s259, 4
        %s261 = scalar_lea.vmem %s0, %s260
        %s262 = smul.u32 2, %s24
        %p263 = scmp.lt.s32.totalorder %s25, 0
        %s264 = scalar_select %p263, %s25, 0
        %p265 = scmp.lt.s32.totalorder %s26, 0
        %s266 = scalar_select %p265, %s26, 0
        %s267 = sadd.s32 %s266, %s264
        %s268 = smul.addr %s267, 8
        %s269 = scalar_lea.vmem %s1, %s268
        %p270 = scmp.lt.s32.totalorder %s25, 0
        %s271 = scalar_select %p270, %s25, 0
        %s272 = smul.addr %s271, 8
        %s273 = scalar_lea.vmem %s2, %s272
        %s274 = smul.u32 2, %s24
        %v275 = vld [vmem:[%s269] sm:$0xff]
        %v276 = vld [vmem:[%s261] sm:$0xff]
        %v277 = vld [vmem:[%s273] sm:$0xff]
        %279 = vset.pattern.permute.xlu0 0
        %280 = vperm.xlu0 %279, %v277
        %v281 = vpop.permute.xlu0 %280
        %284 = vst [vmem:[#allocation1] ss:$2 sm:$0xff] %v276
        %v285 = vld.sshfl [vmem:[#allocation1] sm:$0xff pattern:$0x75316420]
        %v286 = vld.sshfl [vmem:[#allocation1 + $0x8] sm:$0xff pattern:$0x75316420]
        %vm287 = vcmask 31744
        %v289 = vsel %vm287, %v275, 0
        %vm291 = vcmask 1043456
        %v292 = vsel %vm291, %v285, 0
        %v294 = vsel %vm291, %v286, 0
        %296 = vmatpush.msra.mxu0 0.0
        %297 = vmatpush.msra.mxu0 0.0
        %298 = vmatpush.msra.mxu0 0.0
        %299 = vmatpush.msra.mxu0 0.0
        %300 = vmatpush.msra.mxu0 0.0
        %301 = vmatpush.msra.mxu0 0.0
        %302 = vmatpush.msra.mxu0 0.0
        %303 = vmatpush.msra.mxu0 0.0
        %304 = vmatpush.msra.mxu0 0.0
        %305 = vmatpush.msra.mxu0 0.0
        %306 = vmatpush.msra.mxu0 0.0
        %307 = vmatpush.msra.mxu0 0.0
        %308 = vmatpush.msra.mxu0 0.0
        %309 = vmatpush.msra.mxu0 0.0
        %310 = vmatpush.msra.mxu0 0.0
        %311 = vmatpush.msra.mxu0 %v292
        %312 = vmatmul.f32.gmra.mxu0 %v289
        %v313 = vpop.f32.mrf.mxu0
        %v314 = vadd.f32 %v281, %v313
        %315 = vdwg.mxu0
        %316 = vmatpush.msra.mxu0 0.0
        %317 = vmatpush.msra.mxu0 0.0
        %318 = vmatpush.msra.mxu0 0.0
        %319 = vmatpush.msra.mxu0 0.0
        %320 = vmatpush.msra.mxu0 0.0
        %321 = vmatpush.msra.mxu0 0.0
        %322 = vmatpush.msra.mxu0 0.0
        %323 = vmatpush.msra.mxu0 0.0
        %324 = vmatpush.msra.mxu0 0.0
        %325 = vmatpush.msra.mxu0 0.0
        %326 = vmatpush.msra.mxu0 0.0
        %327 = vmatpush.msra.mxu0 0.0
        %328 = vmatpush.msra.mxu0 0.0
        %329 = vmatpush.msra.mxu0 0.0
        %330 = vmatpush.msra.mxu0 0.0
        %331 = vmatpush.msra.mxu0 %v294
        %332 = vmatmul.f32.gmra.mxu0 %v289
        %v333 = vpop.f32.mrf.mxu0
        %v334 = vadd.f32 %v281, %v333
        %335 = vdwg.mxu0
        %336 = vst [vmem:[%s248] sm:$0xff] %v314
        %337 = vst [vmem:[%s248 + $0x8] sm:$0xff] %v334
        %s338 = sand.u32 %s139, 1
        %s339 = scalar_lea.sflag [#allocation3], %s338
        %s340 = sand.u32 %s139, 1
        %s341 = smul.addr %s340, 16
        %s342 = scalar_lea.vmem [#allocation2], %s341
        // Predicated region
        $region33: #{tpu_custom_call.1} parent=31 // pred_check
          %p343 = pneg %p149
        $region34: #{tpu_custom_call.1} parent=31 // pred_check_branch
          %345 = sbr.rel (%p343) target = $region36
        $region35: #{tpu_custom_call.1} parent=31 // pred_region
          %s346 = smul.u32 2, %s24
          %348 = vsyncadd %s339, 0
          %s349 = smul.addr %s25, 2
          %s350 = sadd.s32 %s346, %s349
          %s351 = smul.addr %s23, 2
          %s352 = sadd.s32 %s350, %s351
          %s353 = smul.addr %s352, 8
          %s354 = scalar_lea.hbm %s3, %s353
          %s356 = sshll.u32 %s342, 4
          %s357 = int_to_ptr.vmem [resolvable:$true] %s356
          %s358 = sshll.u32 %s354, 4
          %s359 = int_to_ptr.hbm [resolvable:$true] %s358
          %361 = dma.vmem_to_hbm [thread:$0]  %s357, 256, %s359, %s339
        $region36: #{tpu_custom_call.1} parent=31 // pred_fallthru
          _
      $region32: #{tpu_custom_call.1} parent=5 // pred_fallthru
        _
      %p362 = scmp.le.s32.totalorder 2, %s12
      // Predicated region
      $region37: #{tpu_custom_call.1} parent=5 // pred_check
        %p363 = pneg %p362
      $region38: #{tpu_custom_call.1} parent=5 // pred_check_branch
        %365 = sbr.rel (%p363) target = $region40
      $region39: #{tpu_custom_call.1} parent=5 // pred_region
        %s366 = ssub.s32 %s12, 2
        // Predicated region
        $region41: #{tpu_custom_call.1} parent=39 // pred_check
          %p367 = pneg %p155
        $region42: #{tpu_custom_call.1} parent=39 // pred_check_branch
          %369 = sbr.rel (%p367) target = $region44
        $region43: #{tpu_custom_call.1} parent=39 // pred_region
          %s370 = sand.u32 %s140, 1
          %s371 = scalar_lea.sflag [#allocation3], %s370
          %s372 = sand.u32 %s140, 1
          %s373 = smul.addr %s372, 16
          %s374 = scalar_lea.vmem [#allocation2], %s373
          %376 = dma.done %s371, 256
        $region44: #{tpu_custom_call.1} parent=39 // pred_fallthru
          _
      $region40: #{tpu_custom_call.1} parent=5 // pred_fallthru
        _
    $region6: #{tpu_custom_call.1} parent=1 // loop_footer
      %s16 = sadd.s32 1, %s12
    $region7: #{tpu_custom_call.1} parent=1 // loop_footer_branch
      %11 = sbr.rel target = $region3
    $region8: #{tpu_custom_call.1} parent=1 // loop_exit
      _
    %377 = vsyncpa [#allocation3], 1
    %s378 = scalar_lea.sflag [#allocation3], 1
    %379 = vsyncpa %s378, 1

</llo_original>
